<compile_context>
chip_gen: v5e
topology: v5e:2x2
jax: 0.10.0
libtpu: 0.0.40
codegen_flags: <defaults>
</compile_context>

<pallas_src>
import jax
import jax.numpy as jnp
from jax import lax
from jax.experimental import pallas as pl
from jax.experimental.pallas import tpu as pltpu


def _value_mlp_kernel(x_ref, w1_ref, b1_ref, w2_ref, b2_ref, w3_ref, b3_ref,
                      o_ref):
    # x_ref: (TB, D_in) f32 -> cast to bf16 in-kernel (VPU slot, free next to
    # the MXU).  w1/w2/w3: resident bf16 weights.  b1/b2: epilogue-dtype
    # biases (bf16 on v6e/v7x, f32 on v5e).  b3: (1, 1) f32 scalar in SMEM.
    ew = b1_ref.dtype
    x = x_ref[...].astype(jnp.bfloat16)

    # fc1 + relu1 (bf16 MXU matmul, f32 accumulate, epilogue in `ew`)
    h1 = jnp.dot(x, w1_ref[...], preferred_element_type=jnp.float32)
    h1 = jnp.maximum(h1.astype(ew) + b1_ref[...], 0).astype(jnp.bfloat16)

    # fc2 + relu2
    h2 = jnp.dot(h1, w2_ref[...], preferred_element_type=jnp.float32)
    h2 = jnp.maximum(h2.astype(ew) + b2_ref[...], 0).astype(jnp.bfloat16)

    # fcfinal: contract h2's 256-feature axis against the (1, 256) w3 row,
    # yielding a lane-dense (1, TB) tile (batch on lanes -> unmasked stores).
    out = lax.dot_general(w3_ref[...], h2,
                          dimension_numbers=(((1,), (1,)), ((), ())),
                          preferred_element_type=jnp.float32)
    o_ref[...] = (out + b3_ref[0, 0]).astype(o_ref.dtype)


def _round_up(n, m):
    return ((n + m - 1) // m) * m


def _choose_tile(B, tb_max):
    # Tiny batches: a single 16-row-aligned tile (nothing to pipeline, and 16
    # matches the native bf16 (16, 128) packed tile).
    if B <= 256:
        return max(16, _round_up(B, 16))
    # Larger batches: keep >= 2 grid steps (both v7x TensorCores busy) with a
    # lane-aligned tile, capped at tb_max to amortize per-step overhead.
    return int(min(tb_max, _round_up((B + 1) // 2, 128)))


def _use_bf16_epilogue():
    # bf16 VALU exists on v6e/v7x; v5e (and unknown chips) keep f32 epilogue.
    try:
        kind = jax.devices()[0].device_kind.lower()
    except Exception:
        return False
    return ("v6" in kind) or ("v7" in kind)


def value_forward(x, params, *, tb_max=1024):
    """x: [B, input_size] float32.  params: dict of transposed weights/biases."""
    B, D_in = x.shape
    H = params["w1"].shape[1]          # 256

    TB = _choose_tile(B, tb_max)
    B_pad = _round_up(B, TB)
    if B_pad != B:
        x = jnp.pad(x, ((0, B_pad - B), (0, 0)))

    ew = jnp.bfloat16 if _use_bf16_epilogue() else jnp.float32

    # bf16 weights (halve weight DMA bytes, full-rate MXU).  x stays f32 and
    # is cast inside the kernel -> no extra wrapper-side HBM pass.
    w1 = params["w1"].astype(jnp.bfloat16)
    w2 = params["w2"].astype(jnp.bfloat16)
    w3 = params["w3"].reshape(1, H).astype(jnp.bfloat16)      # (1, 256)
    b1 = params["b1"].reshape(1, H).astype(ew)
    b2 = params["b2"].reshape(1, H).astype(ew)
    b3 = params["b3"].reshape(1, 1).astype(jnp.float32)       # SMEM scalar

    grid = (B_pad // TB,)
    out = pl.pallas_call(
        _value_mlp_kernel,
        out_shape=jax.ShapeDtypeStruct((1, B_pad), jnp.float32),
        grid_spec=pltpu.PrefetchScalarGridSpec(
            num_scalar_prefetch=0,
            grid=grid,
            in_specs=[
                pl.BlockSpec((TB, D_in), lambda i: (i, 0)),   # x tile
                pl.BlockSpec((D_in, H),  lambda i: (0, 0)),   # w1 (resident)
                pl.BlockSpec((1, H),     lambda i: (0, 0)),   # b1
                pl.BlockSpec((H, H),     lambda i: (0, 0)),   # w2 (resident)
                pl.BlockSpec((1, H),     lambda i: (0, 0)),   # b2
                pl.BlockSpec((1, H),     lambda i: (0, 0)),   # w3 row vector
                pl.BlockSpec(memory_space=pltpu.MemorySpace.SMEM),  # b3
            ],
            out_specs=pl.BlockSpec((1, TB), lambda i: (0, i)),
        ),
        compiler_params=pltpu.CompilerParams(
            dimension_semantics=("parallel",),
            vmem_limit_bytes=48 * 1024 * 1024),
    )(x, w1, b1, w2, b2, w3, b3)

    # (1, B_pad) lane-dense slab -> (B, 1) column, dropping padded rows.
    return out[0, :B].reshape(B, 1)


def init_value_params(key, input_size, hidden=256, out=1):
    """Deterministic synthetic init (uniform, like PyTorch default scale)."""
    ks = jax.random.split(key, 6)

    def unif(k, shape, fan_in):
        bound = 1.0 / jnp.sqrt(fan_in)
        return jax.random.uniform(k, shape, jnp.float32, -bound, bound)

    # Stored already transposed to [in, out] for the kernel.
    return {
        "w1": unif(ks[0], (input_size, hidden), input_size),
        "b1": unif(ks[1], (1, hidden), input_size),
        "w2": unif(ks[2], (hidden, hidden), hidden),
        "b2": unif(ks[3], (1, hidden), hidden),
        "w3": unif(ks[4], (hidden, out), hidden),
        "b3": unif(ks[5], (1, out), hidden),
    }


if __name__ == "__main__":
    key = jax.random.PRNGKey(0)
    k_x, k_p = jax.random.split(key)

    batch = 8
    input_size = 32
    x = jax.random.normal(k_x, (batch, input_size), jnp.float32)
    params = init_value_params(k_p, input_size)

    y = value_forward(x, params)
    jax.block_until_ready(y)

    # Reference in plain JAX f32 (same math as the PyTorch module).  The
    # kernel uses bf16 weights/activations with f32 accumulation, so allow a
    # bf16-level tolerance.
    h1 = jnp.maximum(x @ params["w1"] + params["b1"], 0.0)
    h2 = jnp.maximum(h1 @ params["w2"] + params["b2"], 0.0)
    y_ref = h2 @ params["w3"] + params["b3"]

    assert y.shape == (batch, 1)
    assert jnp.allclose(y, y_ref, atol=3e-2, rtol=3e-2), (
        float(jnp.max(jnp.abs(y - y_ref))))

    print("KERNEL_OK")
</pallas_src>

<mosaic_0001>
module attributes {stable_mosaic.version = 11 : i64} {
  func.func @_value_mlp_kernel(%arg0: i32, %arg1: memref<16x32xf32, #tpu.memory_space<vmem>>, %arg2: memref<32x256xbf16, #tpu.memory_space<vmem>>, %arg3: memref<1x256xf32, #tpu.memory_space<vmem>>, %arg4: memref<256x256xbf16, #tpu.memory_space<vmem>>, %arg5: memref<1x256xf32, #tpu.memory_space<vmem>>, %arg6: memref<1x256xbf16, #tpu.memory_space<vmem>>, %arg7: memref<1x1xf32, #tpu.memory_space<smem>>, %arg8: memref<1x16xf32, #tpu.memory_space<vmem>>) attributes {dimension_semantics = [#tpu.dimension_semantics<parallel>], iteration_bounds = array<i64: 1>, scalar_prefetch = 0 : i64, scratch_operands = 0 : i64, tpu.core_type = #tpu.core_type<tc>, window_params = [{transform_indices = @transform_0, window_bounds = array<i64: 16, 32>}, {pipeline_mode = #tpu.pipeline_mode<synchronous>, transform_indices = @transform_1, window_bounds = array<i64: 32, 256>}, {pipeline_mode = #tpu.pipeline_mode<synchronous>, transform_indices = @transform_2, window_bounds = array<i64: 1, 256>}, {pipeline_mode = #tpu.pipeline_mode<synchronous>, transform_indices = @transform_3, window_bounds = array<i64: 256, 256>}, {pipeline_mode = #tpu.pipeline_mode<synchronous>, transform_indices = @transform_4, window_bounds = array<i64: 1, 256>}, {pipeline_mode = #tpu.pipeline_mode<synchronous>, transform_indices = @transform_5, window_bounds = array<i64: 1, 256>}, {transform_indices = @transform_6, window_bounds = array<i64: 1, 1>}, {transform_indices = @transform_7, window_bounds = array<i64: 1, 16>}]} {
    %c0 = arith.constant 0 : index
    %c0_0 = arith.constant 0 : index
    %0 = vector.load %arg1[%c0, %c0_0] : memref<16x32xf32, #tpu.memory_space<vmem>>, vector<16x32xf32>
    %1 = arith.truncf %0 : vector<16x32xf32> to vector<16x32xbf16>
    %c0_1 = arith.constant 0 : index
    %c0_2 = arith.constant 0 : index
    %2 = vector.load %arg2[%c0_1, %c0_2] : memref<32x256xbf16, #tpu.memory_space<vmem>>, vector<32x256xbf16>
    %cst = arith.constant dense<0.000000e+00> : vector<16x256xf32>
    %3 = tpu.matmul %1, %2, %cst {dimension_numbers = #tpu.dot_dimension_numbers<[1], [0], [0], [1], [0, 0, 1, 1], [], []>} : vector<16x32xbf16>, vector<32x256xbf16>, vector<16x256xf32> -> vector<16x256xf32>
    %c0_3 = arith.constant 0 : index
    %c0_4 = arith.constant 0 : index
    %4 = vector.load %arg3[%c0_3, %c0_4] : memref<1x256xf32, #tpu.memory_space<vmem>>, vector<1x256xf32>
    %5 = vector.broadcast %4 : vector<1x256xf32> to vector<16x256xf32>
    %6 = arith.addf %3, %5 : vector<16x256xf32>
    %cst_5 = arith.constant 0.000000e+00 : f32
    %7 = vector.broadcast %cst_5 : f32 to vector<16x256xf32>
    %8 = arith.maximumf %6, %7 : vector<16x256xf32>
    %9 = arith.truncf %8 : vector<16x256xf32> to vector<16x256xbf16>
    %c0_6 = arith.constant 0 : index
    %c0_7 = arith.constant 0 : index
    %10 = vector.load %arg4[%c0_6, %c0_7] : memref<256x256xbf16, #tpu.memory_space<vmem>>, vector<256x256xbf16>
    %cst_8 = arith.constant dense<0.000000e+00> : vector<16x256xf32>
    %11 = tpu.matmul %9, %10, %cst_8 {dimension_numbers = #tpu.dot_dimension_numbers<[1], [0], [0], [1], [0, 0, 1, 1], [], []>} : vector<16x256xbf16>, vector<256x256xbf16>, vector<16x256xf32> -> vector<16x256xf32>
    %c0_9 = arith.constant 0 : index
    %c0_10 = arith.constant 0 : index
    %12 = vector.load %arg5[%c0_9, %c0_10] : memref<1x256xf32, #tpu.memory_space<vmem>>, vector<1x256xf32>
    %13 = vector.broadcast %12 : vector<1x256xf32> to vector<16x256xf32>
    %14 = arith.addf %11, %13 : vector<16x256xf32>
    %cst_11 = arith.constant 0.000000e+00 : f32
    %15 = vector.broadcast %cst_11 : f32 to vector<16x256xf32>
    %16 = arith.maximumf %14, %15 : vector<16x256xf32>
    %17 = arith.truncf %16 : vector<16x256xf32> to vector<16x256xbf16>
    %c0_12 = arith.constant 0 : index
    %c0_13 = arith.constant 0 : index
    %18 = vector.load %arg6[%c0_12, %c0_13] : memref<1x256xbf16, #tpu.memory_space<vmem>>, vector<1x256xbf16>
    %cst_14 = arith.constant dense<0.000000e+00> : vector<1x16xf32>
    %19 = tpu.matmul %18, %17, %cst_14 {dimension_numbers = #tpu.dot_dimension_numbers<[1], [1], [0], [0], [0, 0, 1, 0], [], []>} : vector<1x256xbf16>, vector<16x256xbf16>, vector<1x16xf32> -> vector<1x16xf32>
    %c0_15 = arith.constant 0 : index
    %c0_16 = arith.constant 0 : index
    %20 = memref.load %arg7[%c0_15, %c0_16] : memref<1x1xf32, #tpu.memory_space<smem>>
    %21 = vector.broadcast %20 : f32 to vector<1x16xf32>
    %22 = arith.addf %19, %21 : vector<1x16xf32>
    %c0_17 = arith.constant 0 : index
    %c0_18 = arith.constant 0 : index
    %23 = vector.load %arg8[%c0_17, %c0_18] : memref<1x16xf32, #tpu.memory_space<vmem>>, vector<1x16xf32>
    tpu.vector_store %arg8[%c0_17, %c0_18], %22 {strides = array<i32>} : memref<1x16xf32, #tpu.memory_space<vmem>>, vector<1x16xf32>,
    return
  }
  func.func @transform_0(%arg0: i32) -> (i32, i32) {
    %c0_i32 = arith.constant 0 : i32
    %c0_i32_0 = arith.constant 0 : i32
    return %arg0, %c0_i32 : i32, i32
  }
  func.func @transform_1(%arg0: i32) -> (i32, i32) {
    %c0_i32 = arith.constant 0 : i32
    %c0_i32_0 = arith.constant 0 : i32
    %c0_i32_1 = arith.constant 0 : i32
    return %c0_i32, %c0_i32_0 : i32, i32
  }
  func.func @transform_2(%arg0: i32) -> (i32, i32) {
    %c0_i32 = arith.constant 0 : i32
    %c0_i32_0 = arith.constant 0 : i32
    %c0_i32_1 = arith.constant 0 : i32
    return %c0_i32, %c0_i32_0 : i32, i32
  }
  func.func @transform_3(%arg0: i32) -> (i32, i32) {
    %c0_i32 = arith.constant 0 : i32
    %c0_i32_0 = arith.constant 0 : i32
    %c0_i32_1 = arith.constant 0 : i32
    return %c0_i32, %c0_i32_0 : i32, i32
  }
  func.func @transform_4(%arg0: i32) -> (i32, i32) {
    %c0_i32 = arith.constant 0 : i32
    %c0_i32_0 = arith.constant 0 : i32
    %c0_i32_1 = arith.constant 0 : i32
    return %c0_i32, %c0_i32_0 : i32, i32
  }
  func.func @transform_5(%arg0: i32) -> (i32, i32) {
    %c0_i32 = arith.constant 0 : i32
    %c0_i32_0 = arith.constant 0 : i32
    %c0_i32_1 = arith.constant 0 : i32
    return %c0_i32, %c0_i32_0 : i32, i32
  }
  func.func @transform_6(%arg0: i32) -> (i32, i32) {
    %c0_i32 = arith.constant 0 : i32
    %c0_i32_0 = arith.constant 0 : i32
    %c0_i32_1 = arith.constant 0 : i32
    return %c0_i32, %c0_i32_0 : i32, i32
  }
  func.func @transform_7(%arg0: i32) -> (i32, i32) {
    %c0_i32 = arith.constant 0 : i32
    %c0_i32_0 = arith.constant 0 : i32
    return %c0_i32, %arg0 : i32, i32
  }
}

</mosaic_0001>

<llo_original>
// kernel: tpu_custom_call.1
$region0: #{tpu_custom_call.1}
  #allocation0 [shape = 'u32[]', space=smem, size = 0x4, offset = 0x4, fixed_abs, tag = 'smem constant byte address 0x4 - core index']
  #allocation1 [shape = 'u32[72,128]{1,0:T(1,128)}', space=vmem, size = 0x9000, scoped, tag = 'internal scratch']
  #allocation2 [shape = 'f32[1,1]{1,0:T(1,128)S(6)}', space=smem, size = 0x200, scoped, tag = 'scoped memory for tpu_custom_call.1']
  %s0 = inlined_call_operand.hbm [shape: f32[16,32], index: 0, kind: input, shape index: {}]
  %s1 = inlined_call_operand.hbm [shape: bf16[32,256], index: 1, kind: input, shape index: {}]
  %s2 = inlined_call_operand.vmem [shape: f32[1,256], index: 2, kind: input, shape index: {}]
  %s3 = inlined_call_operand.hbm [shape: bf16[256,256], index: 3, kind: input, shape index: {}]
  %s4 = inlined_call_operand.vmem [shape: f32[1,256], index: 4, kind: input, shape index: {}]
  %s5 = inlined_call_operand.vmem [shape: bf16[1,256], index: 5, kind: input, shape index: {}]
  %s6 = inlined_call_operand.<no memory space> [shape: f32[1,1], index: 6, kind: input, shape index: {}]
  %s7 = inlined_call_operand.hbm [shape: f32[1,16], index: 7, kind: output, shape index: {}]
  %s8 = sld [smem:[#allocation0]]
  $region50: #{tpu_custom_call.1} parent=0
    _
  %s10 = ssub.s32 1, %s8
  %s11 = scalar_select 0, %s10, %s8
  %12 = sst [smem:[#allocation2]] %s6
  $region1: #{tpu_custom_call.1} parent=0
    #allocation3 [shape = 'u8[8192]{0}', space=vmem, size = 0x2000, scoped, tag = 'input window, operand 0, single buffered']
    #allocation4 [shape = 's32[1]{0}', space=sflag, size = 0x4, scoped, tag = 'scoped memory for tpu_custom_call.1']
    #allocation5 [shape = 's32[1]{0}', space=sflag, size = 0x4, scoped, tag = 'scoped memory for tpu_custom_call.1']
    #allocation6 [shape = 'u8[16384]{0}', space=vmem, size = 0x4000, scoped, tag = 'input window, operand 1, single buffered']
    #allocation7 [shape = 's32[1]{0}', space=sflag, size = 0x4, scoped, tag = 'scoped memory for tpu_custom_call.1']
    #allocation8 [shape = 'u8[131072]{0}', space=vmem, size = 0x20000, scoped, tag = 'input window, operand 3, single buffered']
    #allocation9 [shape = 'u8[512]{0}', space=vmem, size = 0x400, scoped, tag = 'output window, operand 0, single buffered']
    %13 = vsyncpa [#allocation4], 0
    %14 = vsyncpa [#allocation7], 0
    %15 = vsyncpa [#allocation5], 0
    // Predicated region
    $region2: #{tpu_custom_call.1} parent=1 // pred_check
      _
    $region3: #{tpu_custom_call.1} parent=1 // pred_check_branch
      %17 = sbr.rel (0) target = $region5
    $region4: #{tpu_custom_call.1} parent=1 // pred_region
      %19 = vsyncadd [#allocation4], 0
      %s20 = sshll.u32 %s0, 4
      %s21 = int_to_ptr.hbm [resolvable:$true] %s20
      %s22 = sshll.u32 [#allocation3], 4
      %s23 = int_to_ptr.vmem [resolvable:$true] %s22
      %28 = dma.hbm_to_vmem [thread:$0]  %s21, 256, %s23, [#allocation4], 128, 128, 8
    $region5: #{tpu_custom_call.1} parent=1 // pred_fallthru
      _
    // Predicated region
    $region6: #{tpu_custom_call.1} parent=1 // pred_check
      _
    $region7: #{tpu_custom_call.1} parent=1 // pred_check_branch
      %30 = sbr.rel (0) target = $region9
    $region8: #{tpu_custom_call.1} parent=1 // pred_region
      %32 = vsyncadd [#allocation7], 0
      %s33 = sshll.u32 %s1, 4
      %s34 = int_to_ptr.hbm [resolvable:$true] %s33
      %s35 = sshll.u32 [#allocation6], 4
      %s36 = int_to_ptr.vmem [resolvable:$true] %s35
      %41 = dma.hbm_to_vmem [thread:$0]  %s34, 512, %s36, [#allocation7], 128, 128, 8
    $region9: #{tpu_custom_call.1} parent=1 // pred_fallthru
      _
    // Predicated region
    $region10: #{tpu_custom_call.1} parent=1 // pred_check
      _
    $region11: #{tpu_custom_call.1} parent=1 // pred_check_branch
      %43 = sbr.rel (0) target = $region13
    $region12: #{tpu_custom_call.1} parent=1 // pred_region
      _
    $region13: #{tpu_custom_call.1} parent=1 // pred_fallthru
      _
    // Predicated region
    $region14: #{tpu_custom_call.1} parent=1 // pred_check
      _
    $region15: #{tpu_custom_call.1} parent=1 // pred_check_branch
      %45 = sbr.rel (0) target = $region17
    $region16: #{tpu_custom_call.1} parent=1 // pred_region
      %47 = vsyncadd [#allocation7], 0
      %s48 = sshll.u32 %s3, 4
      %s49 = int_to_ptr.hbm [resolvable:$true] %s48
      %s50 = sshll.u32 [#allocation8], 4
      %s51 = int_to_ptr.vmem [resolvable:$true] %s50
      %56 = dma.hbm_to_vmem [thread:$0]  %s49, 4096, %s51, [#allocation7], 128, 128, 8
    $region17: #{tpu_custom_call.1} parent=1 // pred_fallthru
      _
    // Predicated region
    $region18: #{tpu_custom_call.1} parent=1 // pred_check
      _
    $region19: #{tpu_custom_call.1} parent=1 // pred_check_branch
      %58 = sbr.rel (0) target = $region21
    $region20: #{tpu_custom_call.1} parent=1 // pred_region
      _
    $region21: #{tpu_custom_call.1} parent=1 // pred_fallthru
      _
    // Predicated region
    $region22: #{tpu_custom_call.1} parent=1 // pred_check
      _
    $region23: #{tpu_custom_call.1} parent=1 // pred_check_branch
      %60 = sbr.rel (0) target = $region25
    $region24: #{tpu_custom_call.1} parent=1 // pred_region
      _
    $region25: #{tpu_custom_call.1} parent=1 // pred_fallthru
      _
    // Predicated region
    $region26: #{tpu_custom_call.1} parent=1 // pred_check
      _
    $region27: #{tpu_custom_call.1} parent=1 // pred_check_branch
      %62 = sbr.rel (0) target = $region29
    $region28: #{tpu_custom_call.1} parent=1 // pred_region
      _
    $region29: #{tpu_custom_call.1} parent=1 // pred_fallthru
      _
    // Predicated region
    $region30: #{tpu_custom_call.1} parent=1 // pred_check
      _
    $region31: #{tpu_custom_call.1} parent=1 // pred_check_branch
      %64 = sbr.rel (0) target = $region33
    $region32: #{tpu_custom_call.1} parent=1 // pred_region
      %66 = dma.done [#allocation4], 256
    $region33: #{tpu_custom_call.1} parent=1 // pred_fallthru
      _
    // Predicated region
    $region34: #{tpu_custom_call.1} parent=1 // pred_check
      _
    $region35: #{tpu_custom_call.1} parent=1 // pred_check_branch
      %68 = sbr.rel (0) target = $region37
    $region36: #{tpu_custom_call.1} parent=1 // pred_region
      %70 = dma.done [#allocation7], 512
    $region37: #{tpu_custom_call.1} parent=1 // pred_fallthru
      _
    // Predicated region
    $region38: #{tpu_custom_call.1} parent=1 // pred_check
      _
    $region39: #{tpu_custom_call.1} parent=1 // pred_check_branch
      %72 = sbr.rel (0) target = $region41
    $region40: #{tpu_custom_call.1} parent=1 // pred_region
      %74 = dma.done [#allocation7], 4096
    $region41: #{tpu_custom_call.1} parent=1 // pred_fallthru
      _
    %v76 = vld [vmem:[#allocation3] sm:$0xff]
    %v77 = vld [vmem:[#allocation3 + $0x8] sm:$0xff]
    %v78 = vpack.c.bf16 %v77, %v76
    %v79 = vld [vmem:[#allocation6] sm:$0xff]
    %v80 = vld [vmem:[#allocation6 + $0x8] sm:$0xff]
    %v81 = vld [vmem:[#allocation6 + $0x10] sm:$0xff]
    %v82 = vld [vmem:[#allocation6 + $0x18] sm:$0xff]
    %v83 = vld [vmem:[%s2] sm:$0x3]
    %v85 = vperm.slane %v83, 0
    %v86 = vperm.slane %v83, 1
    %v93 = vunpack.c.l.b16 %v79
    %v94 = vunpack.c.h.b16 %v79
    %v95 = vunpack.c.l.b16 %v80
    %v96 = vunpack.c.h.b16 %v80
    %v97 = vunpack.c.l.b16 %v81
    %v98 = vunpack.c.h.b16 %v81
    %v99 = vunpack.c.l.b16 %v82
    %v100 = vunpack.c.h.b16 %v82
    %v101 = vpack.c.b16 %v95, %v93
    %v102 = vpack.c.b16 %v96, %v94
    %v103 = vpack.c.b16 %v99, %v97
    %v104 = vpack.c.b16 %v100, %v98
    %vm109 = vcmask 261120
    %v111 = vsel %vm109, %v78, 0
    %113 = vmatpush.bf16.msra.mxu0 0
    %114 = vmatpush.bf16.msra.mxu0 0
    %115 = vmatpush.bf16.msra.mxu0 0
    %116 = vmatpush.bf16.msra.mxu0 0
    %117 = vmatpush.bf16.msra.mxu0 0
    %118 = vmatpush.bf16.msra.mxu0 0
    %119 = vmatpush.bf16.msra.mxu0 %v103
    %120 = vmatpush.bf16.msra.mxu0 %v101
    %121 = vmatmul.bf16.gmra.mxu0 %v111
    %v122 = vpop.f32.mrf.mxu0
    %v123 = vadd.f32 %v85, %v122
    %v124 = vpop.f32.mrf.mxu0
    %v125 = vadd.f32 %v85, %v124
    %126 = vdwg.mxu0
    %127 = vmatpush.bf16.msra.mxu0 0
    %128 = vmatpush.bf16.msra.mxu0 0
    %129 = vmatpush.bf16.msra.mxu0 0
    %130 = vmatpush.bf16.msra.mxu0 0
    %131 = vmatpush.bf16.msra.mxu0 0
    %132 = vmatpush.bf16.msra.mxu0 0
    %133 = vmatpush.bf16.msra.mxu0 %v104
    %134 = vmatpush.bf16.msra.mxu0 %v102
    %135 = vmatmul.bf16.gmra.mxu0 %v111
    %v136 = vpop.f32.mrf.mxu0
    %v137 = vadd.f32 %v86, %v136
    %v138 = vpop.f32.mrf.mxu0
    %v139 = vadd.f32 %v86, %v138
    %140 = vdwg.mxu0
    %v141 = vmax.f32 %v123, 0.0
    %v142 = vmax.f32 %v137, 0.0
    %v143 = vmax.f32 %v125, 0.0
    %v144 = vmax.f32 %v139, 0.0
    %v145 = vpack.c.bf16 %v143, %v141
    %v146 = vpack.c.bf16 %v144, %v142
    %v147 = vld [vmem:[#allocation8] sm:$0xff]
    %v148 = vld [vmem:[#allocation8 + $0x8] sm:$0xff]
    %v149 = vld [vmem:[#allocation8 + $0x10] sm:$0xff]
    %v150 = vld [vmem:[#allocation8 + $0x18] sm:$0xff]
    %v151 = vld [vmem:[#allocation8 + $0x20] sm:$0xff]
    %v152 = vld [vmem:[#allocation8 + $0x28] sm:$0xff]
    %v153 = vld [vmem:[#allocation8 + $0x30] sm:$0xff]
    %v154 = vld [vmem:[#allocation8 + $0x38] sm:$0xff]
    %v155 = vld [vmem:[#allocation8 + $0x40] sm:$0xff]
    %v156 = vld [vmem:[#allocation8 + $0x48] sm:$0xff]
    %v157 = vld [vmem:[#allocation8 + $0x50] sm:$0xff]
    %v158 = vld [vmem:[#allocation8 + $0x58] sm:$0xff]
    %v159 = vld [vmem:[#allocation8 + $0x60] sm:$0xff]
    %v160 = vld [vmem:[#allocation8 + $0x68] sm:$0xff]
    %v161 = vld [vmem:[#allocation8 + $0x70] sm:$0xff]
    %v162 = vld [vmem:[#allocation8 + $0x78] sm:$0xff]
    %v163 = vld [vmem:[#allocation8 + $0x80] sm:$0xff]
    %v164 = vld [vmem:[#allocation8 + $0x88] sm:$0xff]
    %v165 = vld [vmem:[#allocation8 + $0x90] sm:$0xff]
    %v166 = vld [vmem:[#allocation8 + $0x98] sm:$0xff]
    %v167 = vld [vmem:[#allocation8 + $0xa0] sm:$0xff]
    %v168 = vld [vmem:[#allocation8 + $0xa8] sm:$0xff]
    %v169 = vld [vmem:[#allocation8 + $0xb0] sm:$0xff]
    %v170 = vld [vmem:[#allocation8 + $0xb8] sm:$0xff]
    %v171 = vld [vmem:[#allocation8 + $0xc0] sm:$0xff]
    %v172 = vld [vmem:[#allocation8 + $0xc8] sm:$0xff]
    %v173 = vld [vmem:[#allocation8 + $0xd0] sm:$0xff]
    %v174 = vld [vmem:[#allocation8 + $0xd8] sm:$0xff]
    %v175 = vld [vmem:[#allocation8 + $0xe0] sm:$0xff]
    %v176 = vld [vmem:[#allocation8 + $0xe8] sm:$0xff]
    %v177 = vld [vmem:[#allocation8 + $0xf0] sm:$0xff]
    %v178 = vld [vmem:[#allocation8 + $0xf8] sm:$0xff]
    %v179 = vld [vmem:[%s4] sm:$0x3]
    %v181 = vperm.slane %v179, 0
    %v182 = vperm.slane %v179, 1
    %v217 = vunpack.c.l.b16 %v147
    %v218 = vunpack.c.h.b16 %v147
    %v219 = vunpack.c.l.b16 %v148
    %v220 = vunpack.c.h.b16 %v148
    %v221 = vunpack.c.l.b16 %v149
    %v222 = vunpack.c.h.b16 %v149
    %v223 = vunpack.c.l.b16 %v150
    %v224 = vunpack.c.h.b16 %v150
    %v225 = vunpack.c.l.b16 %v151
    %v226 = vunpack.c.h.b16 %v151
    %v227 = vunpack.c.l.b16 %v152
    %v228 = vunpack.c.h.b16 %v152
    %v229 = vunpack.c.l.b16 %v153
    %v230 = vunpack.c.h.b16 %v153
    %v231 = vunpack.c.l.b16 %v154
    %v232 = vunpack.c.h.b16 %v154
    %v233 = vunpack.c.l.b16 %v155
    %v234 = vunpack.c.h.b16 %v155
    %v235 = vunpack.c.l.b16 %v156
    %v236 = vunpack.c.h.b16 %v156
    %v237 = vunpack.c.l.b16 %v157
    %v238 = vunpack.c.h.b16 %v157
    %v239 = vunpack.c.l.b16 %v158
    %v240 = vunpack.c.h.b16 %v158
    %v241 = vunpack.c.l.b16 %v159
    %v242 = vunpack.c.h.b16 %v159
    %v243 = vunpack.c.l.b16 %v160
    %v244 = vunpack.c.h.b16 %v160
    %v245 = vunpack.c.l.b16 %v161
    %v246 = vunpack.c.h.b16 %v161
    %v247 = vunpack.c.l.b16 %v162
    %v248 = vunpack.c.h.b16 %v162
    %v249 = vunpack.c.l.b16 %v163
    %v250 = vunpack.c.h.b16 %v163
    %v251 = vunpack.c.l.b16 %v164
    %v252 = vunpack.c.h.b16 %v164
    %v253 = vunpack.c.l.b16 %v165
    %v254 = vunpack.c.h.b16 %v165
    %v255 = vunpack.c.l.b16 %v166
    %v256 = vunpack.c.h.b16 %v166
    %v257 = vunpack.c.l.b16 %v167
    %v258 = vunpack.c.h.b16 %v167
    %v259 = vunpack.c.l.b16 %v168
    %v260 = vunpack.c.h.b16 %v168
    %v261 = vunpack.c.l.b16 %v169
    %v262 = vunpack.c.h.b16 %v169
    %v263 = vunpack.c.l.b16 %v170
    %v264 = vunpack.c.h.b16 %v170
    %v265 = vunpack.c.l.b16 %v171
    %v266 = vunpack.c.h.b16 %v171
    %v267 = vunpack.c.l.b16 %v172
    %v268 = vunpack.c.h.b16 %v172
    %v269 = vunpack.c.l.b16 %v173
    %v270 = vunpack.c.h.b16 %v173
    %v271 = vunpack.c.l.b16 %v174
    %v272 = vunpack.c.h.b16 %v174
    %v273 = vunpack.c.l.b16 %v175
    %v274 = vunpack.c.h.b16 %v175
    %v275 = vunpack.c.l.b16 %v176
    %v276 = vunpack.c.h.b16 %v176
    %v277 = vunpack.c.l.b16 %v177
    %v278 = vunpack.c.h.b16 %v177
    %v279 = vunpack.c.l.b16 %v178
    %v280 = vunpack.c.h.b16 %v178
    %v281 = vpack.c.b16 %v219, %v217
    %v282 = vpack.c.b16 %v220, %v218
    %v283 = vpack.c.b16 %v223, %v221
    %v284 = vpack.c.b16 %v224, %v222
    %v285 = vpack.c.b16 %v227, %v225
    %v286 = vpack.c.b16 %v228, %v226
    %v287 = vpack.c.b16 %v231, %v229
    %v288 = vpack.c.b16 %v232, %v230
    %v289 = vpack.c.b16 %v235, %v233
    %v290 = vpack.c.b16 %v236, %v234
    %v291 = vpack.c.b16 %v239, %v237
    %v292 = vpack.c.b16 %v240, %v238
    %v293 = vpack.c.b16 %v243, %v241
    %v294 = vpack.c.b16 %v244, %v242
    %v295 = vpack.c.b16 %v247, %v245
    %v296 = vpack.c.b16 %v248, %v246
    %v297 = vpack.c.b16 %v251, %v249
    %v298 = vpack.c.b16 %v252, %v250
    %v299 = vpack.c.b16 %v255, %v253
    %v300 = vpack.c.b16 %v256, %v254
    %v301 = vpack.c.b16 %v259, %v257
    %v302 = vpack.c.b16 %v260, %v258
    %v303 = vpack.c.b16 %v263, %v261
    %v304 = vpack.c.b16 %v264, %v262
    %v305 = vpack.c.b16 %v267, %v265
    %v306 = vpack.c.b16 %v268, %v266
    %v307 = vpack.c.b16 %v271, %v269
    %v308 = vpack.c.b16 %v272, %v270
    %v309 = vpack.c.b16 %v275, %v273
    %v310 = vpack.c.b16 %v276, %v274
    %v311 = vpack.c.b16 %v279, %v277
    %v312 = vpack.c.b16 %v280, %v278
    %345 = vmatpush.bf16.msra.mxu0 %v295
    %346 = vmatpush.bf16.msra.mxu0 %v293
    %347 = vmatpush.bf16.msra.mxu0 %v291
    %348 = vmatpush.bf16.msra.mxu0 %v289
    %349 = vmatpush.bf16.msra.mxu0 %v287
    %350 = vmatpush.bf16.msra.mxu0 %v285
    %351 = vmatpush.bf16.msra.mxu0 %v283
    %352 = vmatpush.bf16.msra.mxu0 %v281
    %353 = vmatmul.bf16.gmra.mxu0 %v145
    %v354 = vpop.f32.mrf.mxu0
    %v355 = vadd.f32 %v181, %v354
    %v356 = vpop.f32.mrf.mxu0
    %v357 = vadd.f32 %v181, %v356
    %358 = vdwg.mxu0
    %359 = vmatpush.bf16.msra.mxu0 %v311
    %360 = vmatpush.bf16.msra.mxu0 %v309
    %361 = vmatpush.bf16.msra.mxu0 %v307
    %362 = vmatpush.bf16.msra.mxu0 %v305
    %363 = vmatpush.bf16.msra.mxu0 %v303
    %364 = vmatpush.bf16.msra.mxu0 %v301
    %365 = vmatpush.bf16.msra.mxu0 %v299
    %366 = vmatpush.bf16.msra.mxu0 %v297
    %367 = vmatmul.bf16.gmra.mxu0 %v146
    %v368 = vpop.f32.mrf.mxu0
    %v369 = vadd.f32 %v355, %v368
    %v370 = vpop.f32.mrf.mxu0
    %v371 = vadd.f32 %v357, %v370
    %372 = vdwg.mxu0
    %373 = vmatpush.bf16.msra.mxu0 %v296
    %374 = vmatpush.bf16.msra.mxu0 %v294
    %375 = vmatpush.bf16.msra.mxu0 %v292
    %376 = vmatpush.bf16.msra.mxu0 %v290
    %377 = vmatpush.bf16.msra.mxu0 %v288
    %378 = vmatpush.bf16.msra.mxu0 %v286
    %379 = vmatpush.bf16.msra.mxu0 %v284
    %380 = vmatpush.bf16.msra.mxu0 %v282
    %381 = vmatmul.bf16.gmra.mxu0 %v145
    %v382 = vpop.f32.mrf.mxu0
    %v383 = vadd.f32 %v182, %v382
    %v384 = vpop.f32.mrf.mxu0
    %v385 = vadd.f32 %v182, %v384
    %386 = vdwg.mxu0
    %387 = vmatpush.bf16.msra.mxu0 %v312
    %388 = vmatpush.bf16.msra.mxu0 %v310
    %389 = vmatpush.bf16.msra.mxu0 %v308
    %390 = vmatpush.bf16.msra.mxu0 %v306
    %391 = vmatpush.bf16.msra.mxu0 %v304
    %392 = vmatpush.bf16.msra.mxu0 %v302
    %393 = vmatpush.bf16.msra.mxu0 %v300
    %394 = vmatpush.bf16.msra.mxu0 %v298
    %395 = vmatmul.bf16.gmra.mxu0 %v146
    %v396 = vpop.f32.mrf.mxu0
    %v397 = vadd.f32 %v383, %v396
    %v398 = vpop.f32.mrf.mxu0
    %v399 = vadd.f32 %v385, %v398
    %400 = vdwg.mxu0
    %v401 = vmax.f32 %v369, 0.0
    %v402 = vmax.f32 %v397, 0.0
    %v403 = vmax.f32 %v371, 0.0
    %v404 = vmax.f32 %v399, 0.0
    %v405 = vpack.c.bf16 %v403, %v401
    %v406 = vpack.c.bf16 %v404, %v402
    %v407 = vld [vmem:[%s5] sm:$0x3]
    %s408 = sld [smem:[#allocation2]]
    %v409 = vstv %s408
    %411 = vst [vmem:[#allocation1] ss:$9 sm:$0xff] %v407
    %v412 = vld [vmem:[#allocation1] sm:$0xff]
    %v413 = vld [vmem:[#allocation1 + $0x9] sm:$0xff]
    %416 = vmatpush.bf16.xpose.msra.mxu0 0
    %417 = vmatpush.bf16.xpose.msra.mxu0 0
    %418 = vmatpush.bf16.xpose.msra.mxu0 0
    %419 = vmatpush.bf16.xpose.msra.mxu0 0
    %420 = vmatpush.bf16.xpose.msra.mxu0 0
    %421 = vmatpush.bf16.xpose.msra.mxu0 0
    %422 = vmatpush.bf16.xpose.msra.mxu0 0
    %423 = vmatpush.bf16.xpose.msra.mxu0 %v405
    %424 = vmatmul.bf16.gmra.mxu0 %v412
    %v425 = vpop.f32.mrf.mxu0
    %v426 = vadd.f32 %v409, %v425
    %v427 = vpop.f32.mrf.mxu0
    %428 = vdwg.mxu0
    %429 = vmatpush.bf16.xpose.msra.mxu0 0
    %430 = vmatpush.bf16.xpose.msra.mxu0 0
    %431 = vmatpush.bf16.xpose.msra.mxu0 0
    %432 = vmatpush.bf16.xpose.msra.mxu0 0
    %433 = vmatpush.bf16.xpose.msra.mxu0 0
    %434 = vmatpush.bf16.xpose.msra.mxu0 0
    %435 = vmatpush.bf16.xpose.msra.mxu0 0
    %436 = vmatpush.bf16.xpose.msra.mxu0 %v406
    %437 = vmatmul.bf16.gmra.mxu0 %v413
    %v438 = vpop.f32.mrf.mxu0
    %v439 = vadd.f32 %v426, %v438
    %v440 = vpop.f32.mrf.mxu0
    %441 = vdwg.mxu0
    %vm442 = vcmask 122880
    %443 = vst.msk [vmem:[#allocation9] sm:$0x1] %vm442, %v439
    // Predicated region
    $region42: #{tpu_custom_call.1} parent=1 // pred_check
      _
    $region43: #{tpu_custom_call.1} parent=1 // pred_check_branch
      %445 = sbr.rel (0) target = $region45
    $region44: #{tpu_custom_call.1} parent=1 // pred_region
      %447 = vsyncadd [#allocation5], 0
      %s449 = sshll.u32 [#allocation9], 4
      %s450 = int_to_ptr.vmem [resolvable:$true] %s449
      %s451 = sshll.u32 %s7, 4
      %s452 = int_to_ptr.hbm [resolvable:$true] %s451
      %454 = dma.vmem_to_hbm [thread:$0]  %s450, 16, %s452, [#allocation5]
    $region45: #{tpu_custom_call.1} parent=1 // pred_fallthru
      _
    // Predicated region
    $region46: #{tpu_custom_call.1} parent=1 // pred_check
      _
    $region47: #{tpu_custom_call.1} parent=1 // pred_check_branch
      %456 = sbr.rel (0) target = $region49
    $region48: #{tpu_custom_call.1} parent=1 // pred_region
      %458 = dma.done [#allocation5], 16
    $region49: #{tpu_custom_call.1} parent=1 // pred_fallthru
      _
    %459 = vsyncpa [#allocation4], 1
    %460 = vsyncpa [#allocation7], 1
    %461 = vsyncpa [#allocation5], 1

</llo_original>
